<compile_context>
chip_gen: v7x
topology: tpu7x:2x2x1
jax: 0.10.0
libtpu: 0.0.40
codegen_flags: <defaults>
</compile_context>

<pallas_src>
import functools

import jax
import jax.numpy as jnp
from jax.experimental import pallas as pl
from jax.experimental.pallas import tpu as pltpu


# ----------------------------------------------------------------------------
# Pallas kernel
# ----------------------------------------------------------------------------
def _pixelnorm_kernel(x_ref, o_ref, *, eps):
    # x_ref / o_ref: (bm, C) tile; each row is normalized independently, so a
    # partial last row-tile is safe (out-of-bounds rows are never written back).
    x = x_ref[...]
    xf = x.astype(jnp.float32)
    ms = jnp.mean(xf * xf, axis=-1, keepdims=True)   # per-row mean of squares (XLU reduce)
    inv = jax.lax.rsqrt(ms + eps)                    # EUP rsqrt
    o_ref[...] = (xf * inv).astype(o_ref.dtype)


def _pick_row_tile(m, c, itemsize, vmem_budget_bytes=4 << 20):
    """Row-tile: multiple of 8, big enough to amortize grid-step overhead, small
    enough that double-buffered in+out blocks stay well inside VMEM (v7x: 64 MiB/TC)."""
    # 4 resident buffers: input + output, each double-buffered.
    rows = vmem_budget_bytes // max(1, 4 * c * itemsize)
    rows = max(8, min(512, (rows // 8) * 8))
    if rows >= m:
        return m          # single block == full array dim (always a legal block shape)
    return rows           # multiple of 8; last block may be partial


def pixel_norm_2d(x2d, eps=1e-8):
    """x2d: [M, C], normalize each row over C (the lane dim)."""
    m, c = x2d.shape
    bm = _pick_row_tile(m, c, x2d.dtype.itemsize)
    grid = (pl.cdiv(m, bm),)
    return pl.pallas_call(
        functools.partial(_pixelnorm_kernel, eps=eps),
        out_shape=jax.ShapeDtypeStruct((m, c), x2d.dtype),
        grid_spec=pltpu.PrefetchScalarGridSpec(
            num_scalar_prefetch=0,
            grid=grid,
            in_specs=[pl.BlockSpec((bm, c), lambda i: (i, 0))],
            out_specs=pl.BlockSpec((bm, c), lambda i: (i, 0)),
        ),
        compiler_params=pltpu.CompilerParams(
            dimension_semantics=("parallel",)),
    )(x2d)


# ----------------------------------------------------------------------------
# JAX wrapper: arbitrary rank, PyTorch dim=1 semantics
# ----------------------------------------------------------------------------
def pixel_norm(x, eps=1e-8):
    """PixelNorm over dim=1, matching the PyTorch reference for any rank >= 2."""
    if x.ndim < 2:
        raise ValueError("PixelNorm expects rank >= 2 (normalizes over dim=1)")
    if x.ndim == 2:
        return pixel_norm_2d(x, eps)
    # [B, C, *spatial] -> channel-last [B, *spatial, C] -> [rows, C]
    perm = (0,) + tuple(range(2, x.ndim)) + (1,)
    xl = jnp.transpose(x, perm)
    lead, c = xl.shape[:-1], xl.shape[-1]
    y2d = pixel_norm_2d(xl.reshape(-1, c), eps)
    yl = y2d.reshape(lead + (c,))
    inv = [0] * x.ndim
    for i, p in enumerate(perm):
        inv[p] = i
    return jnp.transpose(yl, tuple(inv))
    # TODO(synk): if C itself ever exceeds VMEM (C > ~10^6 f32), the reduction
    # would need an extra "arbitrary" grid axis over C with a scratch accumulator.


# ----------------------------------------------------------------------------
if __name__ == "__main__":
    key = jax.random.PRNGKey(0)
    k1, k2 = jax.random.split(key)

    # 2-D latent code (the usual PixelNorm use in the StyleGAN/StyleSwin
    # mapping network): [B, style_dim]
    z = jax.random.normal(k1, (4, 512), jnp.float32)
    # 4-D feature map: [B, C, H, W], normalized over dim=1 (channels)
    x = jax.random.normal(k2, (2, 128, 8, 8), jnp.float32)

    y_z = pixel_norm(z)
    y_x = pixel_norm(x)
    jax.block_until_ready((y_z, y_x))

    def ref(a):
        return a * jax.lax.rsqrt(jnp.mean(a * a, axis=1, keepdims=True) + 1e-8)

    assert y_z.shape == z.shape and y_x.shape == x.shape
    assert bool(jnp.all(jnp.isfinite(y_z))) and bool(jnp.all(jnp.isfinite(y_x)))
    assert bool(jnp.allclose(y_z, ref(z), atol=1e-5, rtol=1e-5))
    assert bool(jnp.allclose(y_x, ref(x), atol=1e-5, rtol=1e-5))
    print("KERNEL_OK")
</pallas_src>

<mosaic_0001>
module attributes {stable_mosaic.version = 11 : i64} {
  func.func @_pixelnorm_kernel(%arg0: i32, %arg1: memref<4x512xf32, #tpu.memory_space<vmem>>, %arg2: memref<4x512xf32, #tpu.memory_space<vmem>>) attributes {dimension_semantics = [#tpu.dimension_semantics<parallel>], iteration_bounds = array<i64: 1>, scalar_prefetch = 0 : i64, scratch_operands = 0 : i64, tpu.core_type = #tpu.core_type<tc>, window_params = [{transform_indices = @transform_0, window_bounds = array<i64: 4, 512>}, {transform_indices = @transform_1, window_bounds = array<i64: 4, 512>}]} {
    %c0 = arith.constant 0 : index
    %c0_0 = arith.constant 0 : index
    %0 = vector.load %arg1[%c0, %c0_0] : memref<4x512xf32, #tpu.memory_space<vmem>>, vector<4x512xf32>
    %1 = arith.mulf %0, %0 : vector<4x512xf32>
    %cst = arith.constant dense<0.000000e+00> : vector<4xf32>
    %2 = vector.multi_reduction <add>, %1, %cst [1] : vector<4x512xf32> to vector<4xf32>
    %3 = vector.shape_cast %2 : vector<4xf32> to vector<4x1xf32>
    %cst_1 = arith.constant 5.120000e+02 : f32
    %4 = vector.broadcast %cst_1 : f32 to vector<4x1xf32>
    %5 = arith.divf %3, %4 : vector<4x1xf32>
    %cst_2 = arith.constant 9.99999993E-9 : f32
    %6 = vector.broadcast %cst_2 : f32 to vector<4x1xf32>
    %7 = arith.addf %5, %6 : vector<4x1xf32>
    %8 = math.rsqrt %7 : vector<4x1xf32>
    %9 = vector.broadcast %8 : vector<4x1xf32> to vector<4x512xf32>
    %10 = arith.mulf %0, %9 : vector<4x512xf32>
    %c0_3 = arith.constant 0 : index
    %c0_4 = arith.constant 0 : index
    %11 = vector.load %arg2[%c0_3, %c0_4] : memref<4x512xf32, #tpu.memory_space<vmem>>, vector<4x512xf32>
    tpu.vector_store %arg2[%c0_3, %c0_4], %10 {strides = array<i32>} : memref<4x512xf32, #tpu.memory_space<vmem>>, vector<4x512xf32>,
    return
  }
  func.func @transform_0(%arg0: i32) -> (i32, i32) {
    %c0_i32 = arith.constant 0 : i32
    %c0_i32_0 = arith.constant 0 : i32
    return %arg0, %c0_i32 : i32, i32
  }
  func.func @transform_1(%arg0: i32) -> (i32, i32) {
    %c0_i32 = arith.constant 0 : i32
    %c0_i32_0 = arith.constant 0 : i32
    return %arg0, %c0_i32 : i32, i32
  }
}

</mosaic_0001>

<llo_original>
// kernel: tpu_custom_call.1
$region0: #{tpu_custom_call.1}
  #allocation0 [shape = 'u32[]', space=smem, size = 0x4, offset = 0x4, fixed_abs, tag = 'smem constant byte address 0x4 - core index']
  #allocation1 [shape = 'u32[144,128]{1,0:T(1,128)}', space=vmem, size = 0x12000, scoped, tag = 'internal scratch']
  %s0 = inlined_call_operand.hbm [shape: f32[4,512], index: 0, kind: input, shape index: {}]
  %s1 = inlined_call_operand.hbm [shape: f32[4,512], index: 1, kind: output, shape index: {}]
  %s2 = sld [smem:[#allocation0]]
  $region18: #{tpu_custom_call.1} parent=0
    _
  %s4 = ssub.s32 1, %s2
  %s5 = scalar_select 0, %s4, %s2
  $region1: #{tpu_custom_call.1} parent=0
    #allocation2 [shape = 'u8[8192]{0}', space=vmem, size = 0x2000, scoped, tag = 'input window, operand 0, single buffered']
    #allocation3 [shape = 's32[1]{0}', space=sflag, size = 0x4, scoped, tag = 'scoped memory for tpu_custom_call.1']
    #allocation4 [shape = 's32[1]{0}', space=sflag, size = 0x4, scoped, tag = 'scoped memory for tpu_custom_call.1']
    #allocation5 [shape = 'u8[8192]{0}', space=vmem, size = 0x2000, scoped, tag = 'output window, operand 0, single buffered']
    %6 = vsyncpa [#allocation3], 0
    %7 = vsyncpa [#allocation4], 0
    // Predicated region
    $region2: #{tpu_custom_call.1} parent=1 // pred_check
      _
    $region3: #{tpu_custom_call.1} parent=1 // pred_check_branch
      %9 = sbr.rel (0) target = $region5
    $region4: #{tpu_custom_call.1} parent=1 // pred_region
      %s11 = ssub.s32 256, 256
      %12 = vsyncadd [#allocation3], %s11
      %s14 = sshll.u32 [#allocation2], 4
      %s15 = int_to_ptr.vmem [resolvable:$true] %s14
      %17 = dma.hbm_to_vmem [thread:$0]  %s0, 256, %s15, [#allocation3]
    $region5: #{tpu_custom_call.1} parent=1 // pred_fallthru
      _
    // Predicated region
    $region6: #{tpu_custom_call.1} parent=1 // pred_check
      _
    $region7: #{tpu_custom_call.1} parent=1 // pred_check_branch
      %19 = sbr.rel (0) target = $region9
    $region8: #{tpu_custom_call.1} parent=1 // pred_region
      %20 = dma.done [#allocation3], 256
    $region9: #{tpu_custom_call.1} parent=1 // pred_fallthru
      _
    %v21 = vld [vmem:[#allocation2] sm:$0xff]
    %v22 = vld [vmem:[#allocation2 + $0x8] sm:$0xff]
    %v23 = vmul.f32 %v21, %v21
    %v24 = vmul.f32 %v22, %v22
    %v27 = vcombine.high %v23, %v23
    %v28 = vcombine.high %v24, %v24
    %vm31 = vcmask 1043456
    %v32 = vsel %vm31, %v23, 0.0
    %v33 = vsel %vm31, %v27, 0.0
    %v34 = vadd.f32 %v32, %v33
    %v35 = vsel %vm31, %v24, 0.0
    %v36 = vadd.f32 %v34, %v35
    %v37 = vsel %vm31, %v28, 0.0
    %v38 = vadd.f32 %v36, %v37
    %39 = vadd.xlane.f32.xlu0 %v38
    %v40 = vpop.xlane.xlu0 %39
    %v41 = vrcp.pop 512.0
    %v42 = vmul.f32 %v40, %v41
    %v43 = vadd.f32 %v42, 1e-08
    %v44 = vrsqrt.pop %v43
    %v47 = vunpack.c.l.s4 839922192
    %v48 = vunpack.c.0.s8 %v47
    %v49 = vlaneseq
    %v50 = vshrl.u32 %v49, 7
    %v51 = vsub.s32 %v48, %v50
    %v52 = vrot.slane %v44, %v51
    %v54 = vmul.f32 %v21, %v52
    %v55 = vmul.f32 %v22, %v52
    %56 = vst [vmem:[#allocation5] sm:$0xff] %v54
    %57 = vst [vmem:[#allocation5 + $0x8] sm:$0xff] %v55
    // Predicated region
    $region10: #{tpu_custom_call.1} parent=1 // pred_check
      _
    $region11: #{tpu_custom_call.1} parent=1 // pred_check_branch
      %59 = sbr.rel (0) target = $region13
    $region12: #{tpu_custom_call.1} parent=1 // pred_region
      %s61 = ssub.s32 256, 256
      %62 = vsyncadd [#allocation4], %s61
      %s64 = sshll.u32 [#allocation5], 4
      %s65 = int_to_ptr.vmem [resolvable:$true] %s64
      %67 = dma.vmem_to_hbm [thread:$0]  %s65, 256, %s1, [#allocation4]
    $region13: #{tpu_custom_call.1} parent=1 // pred_fallthru
      _
    // Predicated region
    $region14: #{tpu_custom_call.1} parent=1 // pred_check
      _
    $region15: #{tpu_custom_call.1} parent=1 // pred_check_branch
      %69 = sbr.rel (0) target = $region17
    $region16: #{tpu_custom_call.1} parent=1 // pred_region
      %70 = dma.done [#allocation4], 256
    $region17: #{tpu_custom_call.1} parent=1 // pred_fallthru
      _
    %71 = vsyncpa [#allocation3], 1
    %72 = vsyncpa [#allocation4], 1

</llo_original>
